<compile_context>
chip_gen: v6e
topology: v6e:2x2x1
jax: 0.10.0
libtpu: 0.0.40
codegen_flags: <defaults>
</compile_context>

<pallas_src>
import functools

import numpy as np
import jax
import jax.numpy as jnp
from jax import lax
from jax.experimental import pallas as pl
from jax.experimental.pallas import tpu as pltpu


# --------------------------------------------------------------------------------------
# Positional-encoding table (faithful, vectorized port of the PyTorch construction)
# --------------------------------------------------------------------------------------
def _make_pos_table(d_model: int, max_len: int) -> np.ndarray:
    pos = np.arange(max_len, dtype=np.float64)[:, None]
    i = np.arange(d_model, dtype=np.float64)[None, :]
    table = pos / np.power(10000.0, 2.0 * i / d_model)   # module uses 2*i (not 2*(i//2))
    table[0, :] = 0.0
    table[1:, 0::2] = np.sin(table[1:, 0::2])
    table[1:, 1::2] = np.cos(table[1:, 1::2])
    return table.astype(np.float32)


# --------------------------------------------------------------------------------------
# Kernels
# --------------------------------------------------------------------------------------
def _pe_add_kernel(enc_ref, pos_ref, out_ref):
    # enc_ref: (B, TS, L), pos_ref: (TS, L) -> broadcast over batch.  Pure VPU add; the
    # kernel is HBM-bandwidth bound.
    out_ref[...] = enc_ref[...] + pos_ref[...][None, :, :]


def _pe_add_dropout_prng_kernel(seed_ref, enc_ref, pos_ref, out_ref, *, threshold, inv_keep):
    # In-kernel dropout with the hardware PRNG: zero mask HBM traffic.
    #  * re-seed per grid step so every block gets an independent stream,
    #  * consecutive draws inside the batch loop advance the stateful PRNG, so every batch
    #    row inside the block also gets independent bits,
    #  * keep decision: 31 uniform random bits compared against threshold = (1-p) * 2^31,
    #  * the 1/(1-p) scale is applied in f32 (no low-precision rounding of the scale).
    pltpu.prng_seed(seed_ref[0] + pl.program_id(0))
    pos = pos_ref[...].astype(jnp.float32)                       # (TS, L)
    scale = jnp.float32(inv_keep)
    thresh = jnp.int32(threshold)

    def body(b, carry):
        bits = pltpu.prng_random_bits(pos.shape)                 # fresh (TS, L) draw
        if bits.dtype != jnp.int32:
            bits = pltpu.bitcast(bits, jnp.int32)
        u = jnp.bitwise_and(bits, jnp.int32(0x7FFFFFFF))         # uniform in [0, 2^31)
        keep = (u < thresh).astype(jnp.float32)                  # P(keep) = 1 - p
        x = enc_ref[b].astype(jnp.float32) + pos
        out_ref[b] = (x * keep * scale).astype(out_ref.dtype)
        return carry

    lax.fori_loop(0, enc_ref.shape[0], body, 0)


def _pe_add_dropout_mask_kernel(enc_ref, pos_ref, mask_ref, out_ref, *, inv_keep):
    # Fallback path (non-TPU / interpret only): 0/1 keep mask streamed from HBM; the
    # 1/(1-p) scale is applied in f32 here, not baked into the mask.
    x = enc_ref[...].astype(jnp.float32) + pos_ref[...][None, :, :].astype(jnp.float32)
    out_ref[...] = (x * mask_ref[...].astype(jnp.float32) * jnp.float32(inv_keep)
                    ).astype(out_ref.dtype)


# --------------------------------------------------------------------------------------
# Tiling heuristics
# --------------------------------------------------------------------------------------
def _tune_for_device():
    """Returns (target enc-bytes per block, vmem_limit_bytes or None, force >=2 grid steps)."""
    kind = ""
    try:
        dev = jax.devices()[0]
        if dev.platform == "tpu":
            kind = dev.device_kind.lower()
    except Exception:
        pass
    if "v7" in kind:
        # 64 MiB physical VMEM, 2 TensorCores/chip: medium blocks, force >= 2 parallel steps.
        return 4 << 20, 48 << 20, True
    if "v6" in kind:
        # 128 MiB physical VMEM, ~1.4 TB/s HBM: big blocks amortize per-step overhead.
        return 6 << 20, 64 << 20, False
    if "v5 lite" in kind or "v5e" in kind or "v5lite" in kind:
        # Keep the (3-stream fallback) double-buffered working set well under 16 MiB scoped.
        return 3 << 19, 32 << 20, False
    return 2 << 20, None, False


def _choose_ts(s2, target_rows, want_multi_step):
    """Block row count: multiple of 8 (or full extent), preferably dividing s2 (no ragged tail)."""
    cap = max(8, int(target_rows))
    force_split = want_multi_step and s2 >= 16
    if force_split:
        cap = min(cap, s2 // 2)
    if s2 <= cap and not force_split:
        return s2                                   # single full-extent block
    cap = max(8, (cap // 8) * 8)
    best = 0
    ts = 8
    limit = min(cap, s2)
    while ts <= limit:
        if s2 % ts == 0:
            best = ts
        ts += 8
    if best:
        return best
    return min(cap, s2)                             # ragged-tail fallback (rare)


# --------------------------------------------------------------------------------------
# Forward wrapper (equivalent of PositionalEncoding.forward(enc_inputs, tindex))
# --------------------------------------------------------------------------------------
def positional_encoding_forward(enc_inputs, tindex, pos_table,
                                dropout_p: float = 0.1,
                                deterministic: bool = True,
                                rng_key=None):
    B, S, D = enc_inputs.shape
    max_len = pos_table.shape[0]
    dtype = enc_inputs.dtype
    itemsize = jnp.dtype(dtype).itemsize

    # Row gather in the wrapper (tiny S x D slab); clamp so a bad tindex can never go OOB.
    tindex = tindex.astype(jnp.int32)
    norm_idx = jnp.clip(tindex - tindex[0], 0, max_len - 1)
    pos_slab = jnp.take(pos_table, norm_idx, axis=0).astype(dtype)          # (S, D)

    # Lane-dense repack: fold adjacent sequence positions into the lane dim so the last dim
    # becomes a multiple of 128 (unmasked vst) when D is a small divisor of 128.
    pack = 1
    if D < 128 and 128 % D == 0 and S % (128 // D) == 0:
        pack = 128 // D
    # TODO(synk): for D that is neither a multiple nor divisor of 128 (e.g. 96, 160) the
    # output stores are masked; padding D to the next multiple of 128 would trade extra HBM
    # bytes for unmasked stores and was judged not worth it for this memory-bound kernel.
    S2, L = S // pack, D * pack
    enc2 = enc_inputs.reshape(B, S2, L)
    pos2 = pos_slab.reshape(S2, L)

    use_dropout = (not deterministic) and dropout_p > 0.0
    on_tpu = jax.default_backend() == "tpu"
    use_prng = use_dropout and on_tpu
    n_streams = 3 if (use_dropout and not use_prng) else 2   # full-size arrays hitting HBM

    # Generation-aware block sizing over the packed sequence axis.
    target_bytes, vmem_limit, want_multi_step = _tune_for_device()
    bytes_per_row = max(1, B * L * itemsize)
    target_rows = max(1, (target_bytes * 2) // (n_streams * bytes_per_row))
    TS = _choose_ts(S2, target_rows, want_multi_step)
    grid = (pl.cdiv(S2, TS),)

    enc_map = lambda i, *_: (0, i, 0)
    pos_map = lambda i, *_: (i, 0)
    enc_spec = pl.BlockSpec((B, TS, L), enc_map)
    pos_spec = pl.BlockSpec((TS, L), pos_map)
    out_spec = pl.BlockSpec((B, TS, L), enc_map)
    cparams = pltpu.CompilerParams(dimension_semantics=("parallel",),
                                   vmem_limit_bytes=vmem_limit)
    elems = B * S * D
    pos_bytes = S * D * itemsize

    # ---- eval path: dropout is identity ------------------------------------------------
    if not use_dropout:
        ce = pl.CostEstimate(flops=elems, transcendentals=0,
                             bytes_accessed=2 * elems * itemsize + pos_bytes)
        out2 = pl.pallas_call(
            _pe_add_kernel,
            out_shape=jax.ShapeDtypeStruct((B, S2, L), dtype),
            grid_spec=pl.GridSpec(grid=grid, in_specs=[enc_spec, pos_spec],
                                  out_specs=out_spec),
            compiler_params=cparams, cost_estimate=ce,
        )(enc2, pos2)
        return out2.reshape(B, S, D)

    # ---- training path -----------------------------------------------------------------
    if rng_key is None:
        rng_key = jax.random.PRNGKey(0)
    inv_keep = 1.0 / (1.0 - dropout_p)

    if use_prng:
        # In-kernel hardware PRNG (no mask HBM traffic).  Seed is a scalar-prefetch arg.
        threshold = min(int(round((1.0 - dropout_p) * 2147483648.0)), 2147483647)
        seed = jax.random.randint(rng_key, (1,), 0, 2147483647, dtype=jnp.int32)
        kern = functools.partial(_pe_add_dropout_prng_kernel,
                                 threshold=threshold, inv_keep=inv_keep)
        ce = pl.CostEstimate(flops=4 * elems, transcendentals=0,
                             bytes_accessed=2 * elems * itemsize + pos_bytes)
        out2 = pl.pallas_call(
            kern,
            out_shape=jax.ShapeDtypeStruct((B, S2, L), dtype),
            grid_spec=pltpu.PrefetchScalarGridSpec(
                num_scalar_prefetch=1, grid=grid,
                in_specs=[enc_spec, pos_spec], out_specs=out_spec),
            compiler_params=cparams, cost_estimate=ce,
        )(seed, enc2, pos2)
        return out2.reshape(B, S, D)

    # Fallback (non-TPU / interpret): 0/1 keep mask streamed alongside enc.
    # TODO(synk): this path only exists because the in-kernel PRNG lowers on real TPUs only.
    keep = jax.random.bernoulli(rng_key, 1.0 - dropout_p, (B, S, D))
    mask2 = keep.astype(dtype).reshape(B, S2, L)
    kern = functools.partial(_pe_add_dropout_mask_kernel, inv_keep=inv_keep)
    ce = pl.CostEstimate(flops=3 * elems, transcendentals=0,
                         bytes_accessed=3 * elems * itemsize + pos_bytes)
    out2 = pl.pallas_call(
        kern,
        out_shape=jax.ShapeDtypeStruct((B, S2, L), dtype),
        grid_spec=pl.GridSpec(grid=grid,
                              in_specs=[enc_spec, pos_spec,
                                        pl.BlockSpec((B, TS, L), enc_map)],
                              out_specs=out_spec),
        compiler_params=cparams, cost_estimate=ce,
    )(enc2, pos2, mask2)
    return out2.reshape(B, S, D)


# --------------------------------------------------------------------------------------
# Demo / self-test
# --------------------------------------------------------------------------------------
if __name__ == "__main__":
    B, S, D = 2, 8, 32          # small shapes (module's d_model -> 32)
    MAX_LEN = 512               # module default is 50000; kept small for the demo table

    key = jax.random.PRNGKey(0)
    k_enc, k_drop = jax.random.split(key)
    enc = jax.random.normal(k_enc, (B, S, D), dtype=jnp.float32)
    tindex = 100 + 3 * jnp.arange(S, dtype=jnp.int32)     # arbitrary monotone timestamps
    pos_table = jnp.asarray(_make_pos_table(D, MAX_LEN))

    # eval-mode (dropout == identity) — exact check against a pure-NumPy reference.
    out = positional_encoding_forward(enc, tindex, pos_table, deterministic=True)
    out = jax.block_until_ready(out)
    norm_idx = np.asarray(tindex - tindex[0])
    ref = np.asarray(enc) + np.asarray(pos_table)[norm_idx, :][None, :, :]
    np.testing.assert_allclose(np.asarray(out), ref, rtol=1e-6, atol=1e-6)

    # training path (in-kernel PRNG dropout) — every element must be either 0 (dropped)
    # or ref / (1-p) (kept, scaled in f32), and the empirical drop rate must be sane.
    p = 0.1
    out_drop = np.asarray(jax.block_until_ready(
        positional_encoding_forward(enc, tindex, pos_table, dropout_p=p,
                                    deterministic=False, rng_key=k_drop)))
    kept_ref = ref / (1.0 - p)
    is_dropped = np.abs(out_drop) <= 1e-6
    is_kept = np.abs(out_drop - kept_ref) <= 1e-4 * (1.0 + np.abs(kept_ref))
    assert np.all(is_dropped | is_kept), "dropout output is neither 0 nor scaled input"
    frac = float(is_dropped.mean())
    assert 0.0 < frac < 0.4, f"implausible dropout rate {frac:.3f} for p={p}"

    print("KERNEL_OK")
</pallas_src>

<mosaic_0001>
module attributes {stable_mosaic.version = 11 : i64} {
  func.func @_pe_add_kernel(%arg0: i32, %arg1: memref<2x2x128xf32, #tpu.memory_space<vmem>>, %arg2: memref<2x128xf32, #tpu.memory_space<vmem>>, %arg3: memref<2x2x128xf32, #tpu.memory_space<vmem>>) attributes {dimension_semantics = [#tpu.dimension_semantics<parallel>], iteration_bounds = array<i64: 1>, scalar_prefetch = 0 : i64, scratch_operands = 0 : i64, tpu.core_type = #tpu.core_type<tc>, window_params = [{transform_indices = @transform_0, window_bounds = array<i64: 2, 2, 128>}, {transform_indices = @transform_1, window_bounds = array<i64: 2, 128>}, {transform_indices = @transform_2, window_bounds = array<i64: 2, 2, 128>}]} {
    %c0 = arith.constant 0 : index
    %c0_0 = arith.constant 0 : index
    %c0_1 = arith.constant 0 : index
    %0 = vector.load %arg1[%c0, %c0_0, %c0_1] : memref<2x2x128xf32, #tpu.memory_space<vmem>>, vector<2x2x128xf32>
    %c0_2 = arith.constant 0 : index
    %c0_3 = arith.constant 0 : index
    %1 = vector.load %arg2[%c0_2, %c0_3] : memref<2x128xf32, #tpu.memory_space<vmem>>, vector<2x128xf32>
    %2 = vector.shape_cast %1 : vector<2x128xf32> to vector<1x2x128xf32>
    %3 = vector.broadcast %2 : vector<1x2x128xf32> to vector<2x2x128xf32>
    %4 = arith.addf %0, %3 : vector<2x2x128xf32>
    %c0_4 = arith.constant 0 : index
    %c0_5 = arith.constant 0 : index
    %c0_6 = arith.constant 0 : index
    %5 = vector.load %arg3[%c0_4, %c0_5, %c0_6] : memref<2x2x128xf32, #tpu.memory_space<vmem>>, vector<2x2x128xf32>
    tpu.vector_store %arg3[%c0_4, %c0_5, %c0_6], %4 {strides = array<i32>} : memref<2x2x128xf32, #tpu.memory_space<vmem>>, vector<2x2x128xf32>,
    return
  }
  func.func @transform_0(%arg0: i32) -> (i32, i32, i32) {
    %c0_i32 = arith.constant 0 : i32
    %c0_i32_0 = arith.constant 0 : i32
    %c0_i32_1 = arith.constant 0 : i32
    return %c0_i32, %arg0, %c0_i32_0 : i32, i32, i32
  }
  func.func @transform_1(%arg0: i32) -> (i32, i32) {
    %c0_i32 = arith.constant 0 : i32
    %c0_i32_0 = arith.constant 0 : i32
    return %arg0, %c0_i32 : i32, i32
  }
  func.func @transform_2(%arg0: i32) -> (i32, i32, i32) {
    %c0_i32 = arith.constant 0 : i32
    %c0_i32_0 = arith.constant 0 : i32
    %c0_i32_1 = arith.constant 0 : i32
    return %c0_i32, %arg0, %c0_i32_0 : i32, i32, i32
  }
}

</mosaic_0001>

<llo_original>
// kernel: tpu_custom_call.1
$region0: #{tpu_custom_call.1}
  #allocation0 [shape = 'u32[]', space=smem, size = 0x4, offset = 0x4, fixed_abs, tag = 'smem constant byte address 0x4 - core index']
  #allocation1 [shape = 'u32[144,128]{1,0:T(1,128)}', space=vmem, size = 0x12000, scoped, tag = 'internal scratch']
  %s0 = inlined_call_operand.hbm [shape: f32[2,2,128], index: 0, kind: input, shape index: {}]
  %s1 = inlined_call_operand.hbm [shape: f32[2,128], index: 1, kind: input, shape index: {}]
  %s2 = inlined_call_operand.hbm [shape: f32[2,2,128], index: 2, kind: output, shape index: {}]
  %s3 = sld [smem:[#allocation0]]
  $region26: #{tpu_custom_call.1} parent=0
    _
  %s5 = ssub.s32 1, %s3
  %s6 = scalar_select 0, %s5, %s3
  $region1: #{tpu_custom_call.1} parent=0
    #allocation2 [shape = 'u8[2048]{0}', space=vmem, size = 0x800, scoped, tag = 'input window, operand 0, single buffered']
    #allocation3 [shape = 's32[1]{0}', space=sflag, size = 0x4, scoped, tag = 'scoped memory for tpu_custom_call.1']
    #allocation4 [shape = 's32[1]{0}', space=sflag, size = 0x4, scoped, tag = 'scoped memory for tpu_custom_call.1']
    #allocation5 [shape = 'u8[1024]{0}', space=vmem, size = 0x400, scoped, tag = 'input window, operand 1, single buffered']
    #allocation6 [shape = 's32[1]{0}', space=sflag, size = 0x4, scoped, tag = 'scoped memory for tpu_custom_call.1']
    #allocation7 [shape = 'u8[2048]{0}', space=vmem, size = 0x800, scoped, tag = 'output window, operand 0, single buffered']
    %7 = vsyncpa [#allocation3], 0
    %8 = vsyncpa [#allocation6], 0
    %9 = vsyncpa [#allocation4], 0
    // Predicated region
    $region2: #{tpu_custom_call.1} parent=1 // pred_check
      _
    $region3: #{tpu_custom_call.1} parent=1 // pred_check_branch
      %11 = sbr.rel (0) target = $region5
    $region4: #{tpu_custom_call.1} parent=1 // pred_region
      %s13 = ssub.s32 64, 64
      %14 = vsyncadd [#allocation3], %s13
      %s15 = sshll.u32 [#allocation2], 4
      %s16 = int_to_ptr.vmem [resolvable:$true] %s15
      %21 = dma.hbm_to_vmem [thread:$0]  %s0, 64, %s16, [#allocation3], 32, 32, 2
    $region5: #{tpu_custom_call.1} parent=1 // pred_fallthru
      _
    // Predicated region
    $region6: #{tpu_custom_call.1} parent=1 // pred_check
      _
    $region7: #{tpu_custom_call.1} parent=1 // pred_check_branch
      %23 = sbr.rel (0) target = $region9
    $region8: #{tpu_custom_call.1} parent=1 // pred_region
      %s25 = ssub.s32 32, 32
      %26 = vsyncadd [#allocation6], %s25
      %s28 = sshll.u32 [#allocation5], 4
      %s29 = int_to_ptr.vmem [resolvable:$true] %s28
      %31 = dma.hbm_to_vmem [thread:$0]  %s1, 32, %s29, [#allocation6]
    $region9: #{tpu_custom_call.1} parent=1 // pred_fallthru
      _
    // Predicated region
    $region10: #{tpu_custom_call.1} parent=1 // pred_check
      _
    $region11: #{tpu_custom_call.1} parent=1 // pred_check_branch
      %33 = sbr.rel (0) target = $region13
    $region12: #{tpu_custom_call.1} parent=1 // pred_region
      %34 = dma.done [#allocation3], 64
    $region13: #{tpu_custom_call.1} parent=1 // pred_fallthru
      _
    // Predicated region
    $region14: #{tpu_custom_call.1} parent=1 // pred_check
      _
    $region15: #{tpu_custom_call.1} parent=1 // pred_check_branch
      %36 = sbr.rel (0) target = $region17
    $region16: #{tpu_custom_call.1} parent=1 // pred_region
      %37 = dma.done [#allocation6], 32
    $region17: #{tpu_custom_call.1} parent=1 // pred_fallthru
      _
    %v38 = vld [vmem:[#allocation2] sm:$0x3]
    %v39 = vld [vmem:[#allocation2 + $0x2] sm:$0x3]
    %v40 = vld [vmem:[#allocation5] sm:$0x3]
    %v41 = vadd.f32 %v38, %v40
    %v42 = vadd.f32 %v39, %v40
    %43 = vst [vmem:[#allocation7] sm:$0x3] %v41
    %44 = vst [vmem:[#allocation7 + $0x2] sm:$0x3] %v42
    // Predicated region
    $region18: #{tpu_custom_call.1} parent=1 // pred_check
      _
    $region19: #{tpu_custom_call.1} parent=1 // pred_check_branch
      %46 = sbr.rel (0) target = $region21
    $region20: #{tpu_custom_call.1} parent=1 // pred_region
      %s48 = ssub.s32 64, 64
      %49 = vsyncadd [#allocation4], %s48
      %s50 = sshll.u32 [#allocation7], 4
      %s51 = int_to_ptr.vmem [resolvable:$true] %s50
      %56 = dma.vmem_to_hbm [thread:$0]  %s51, 64, %s2, [#allocation4], 32, 32, 2
    $region21: #{tpu_custom_call.1} parent=1 // pred_fallthru
      _
    // Predicated region
    $region22: #{tpu_custom_call.1} parent=1 // pred_check
      _
    $region23: #{tpu_custom_call.1} parent=1 // pred_check_branch
      %58 = sbr.rel (0) target = $region25
    $region24: #{tpu_custom_call.1} parent=1 // pred_region
      %59 = dma.done [#allocation4], 64
    $region25: #{tpu_custom_call.1} parent=1 // pred_fallthru
      _
    %60 = vsyncpa [#allocation3], 1
    %61 = vsyncpa [#allocation6], 1
    %62 = vsyncpa [#allocation4], 1

</llo_original>
